<compile_context>
chip_gen: v6e
topology: v6e:2x2x1
jax: 0.10.0
libtpu: 0.0.40
codegen_flags: <defaults>
</compile_context>

<pallas_src>
import jax
import jax.numpy as jnp
from jax.experimental import pallas as pl
from jax.experimental.pallas import tpu as pltpu


def _round_up(x: int, m: int) -> int:
    return ((x + m - 1) // m) * m


def _qnet_kernel(x_ref, w1_ref, b1_ref, w2_ref, b2_ref, o_ref):
    # h = relu(x @ W1 + b1) — MXU accumulates in f32 regardless of operand dtype.
    h = jnp.dot(x_ref[...], w1_ref[...], preferred_element_type=jnp.float32)
    h = jnp.maximum(h + b1_ref[...], 0.0)                  # (TB, H_pad) + (1, H_pad), f32
    # y = h @ W2 + b2 — cast only the kernel-internal activation to the resident W2 dtype
    # (no-op for the f32 path; one cheap VPU pack for the bf16 path).
    y = jnp.dot(h.astype(w2_ref.dtype), w2_ref[...], preferred_element_type=jnp.float32)
    o_ref[...] = (y + b2_ref[...]).astype(o_ref.dtype)


def prepare_qnet_params(w1, b1, w2, b2, *, matmul_dtype=jnp.float32):
    """One-time parameter prep (call outside the hot path).

    Pads the kernel-internal hidden dim to a multiple of 128 (zero columns of W1 / zero
    entries of b1 give relu(0)=0, and the matching zero rows of W2 contribute nothing, so
    the padding is mathematically transparent) and casts the weights to the MXU dtype.
    Biases stay f32 since they are added after the f32 accumulation.
    Input/output feature dims are NOT padded — they stream HBM<->VMEM at true width.
    """
    hidden = w1.shape[1]
    dh = _round_up(hidden, 128) - hidden
    w1p = jnp.pad(w1, ((0, 0), (0, dh))).astype(matmul_dtype)
    b1p = jnp.pad(b1, ((0, 0), (0, dh))).astype(jnp.float32)
    w2p = jnp.pad(w2, ((0, dh), (0, 0))).astype(matmul_dtype)
    b2p = b2.astype(jnp.float32)
    return w1p, b1p, w2p, b2p


@jax.jit
def linear_qnet_forward(x, w1p, b1p, w2p, b2p):
    """Forward pass of Linear_QNet.

    x:   (B, input_size)             f32 or bf16
    w1p: (input_size, hidden_pad)    f32 or bf16 (from prepare_qnet_params)
    b1p: (1, hidden_pad)             f32
    w2p: (hidden_pad, output_size)   f32 or bf16
    b2p: (1, output_size)            f32
    returns (B, output_size) f32
    """
    B, in_size = x.shape
    hid_pad = w1p.shape[1]
    out_size = w2p.shape[1]

    # Feed the MXU matched operand dtypes.  If x arrives wider than the pre-cast weights,
    # cast it once in HBM here (halves x DMA traffic) rather than per grid step in-kernel.
    if x.dtype != w1p.dtype:
        x = x.astype(w1p.dtype)

    # --- Batch tiling --------------------------------------------------------
    # Pad B only to a multiple of 8 sublanes, then split into num_tiles tiles that divide
    # the padded batch exactly.  TB is capped at 2048 (per-step VMEM: x + out double
    # buffers + resident weights + (TB, hid_pad) f32 activation ~< 4 MB), and we use >= 2
    # tiles whenever possible so the "parallel" axis keeps both v7x TensorCores busy.
    B8 = _round_up(B, 8)
    rows8 = B8 // 8
    max_tb_rows8 = 2048 // 8
    num_tiles = 1 if rows8 < 2 else max(2, pl.cdiv(rows8, max_tb_rows8))
    TB = pl.cdiv(rows8, num_tiles) * 8
    b_pad = TB * num_tiles

    if b_pad != B:
        x = jnp.pad(x, ((0, b_pad - B), (0, 0)))

    out = pl.pallas_call(
        _qnet_kernel,
        out_shape=jax.ShapeDtypeStruct((b_pad, out_size), jnp.float32),
        grid_spec=pltpu.PrefetchScalarGridSpec(
            num_scalar_prefetch=0,
            grid=(num_tiles,),
            in_specs=[
                pl.BlockSpec((TB, in_size), lambda i: (i, 0)),        # x tile per step (true width)
                pl.BlockSpec((in_size, hid_pad), lambda i: (0, 0)),   # W1 resident
                pl.BlockSpec((1, hid_pad), lambda i: (0, 0)),         # b1 resident
                pl.BlockSpec((hid_pad, out_size), lambda i: (0, 0)),  # W2 resident
                pl.BlockSpec((1, out_size), lambda i: (0, 0)),        # b2 resident
            ],
            out_specs=pl.BlockSpec((TB, out_size), lambda i: (i, 0)), # out tile (true width)
        ),
        compiler_params=pltpu.CompilerParams(
            # Batch tiles are independent -> shard across the 2 TCs on v7x.
            dimension_semantics=("parallel",),
        ),
    )(x, w1p, b1p, w2p, b2p)

    if b_pad != B:
        out = out[:B]
    return out


def init_qnet_params(key, input_size, hidden_size, output_size):
    """Deterministic init mimicking PyTorch nn.Linear default U[-1/sqrt(fan_in), 1/sqrt(fan_in)].

    Stored as (in, out) = transpose of PyTorch's (out, in) weight layout.
    """
    k1, k2, k3, k4 = jax.random.split(key, 4)
    bound1 = 1.0 / jnp.sqrt(input_size)
    bound2 = 1.0 / jnp.sqrt(hidden_size)
    w1 = jax.random.uniform(k1, (input_size, hidden_size), jnp.float32, -bound1, bound1)
    b1 = jax.random.uniform(k2, (1, hidden_size), jnp.float32, -bound1, bound1)
    w2 = jax.random.uniform(k3, (hidden_size, output_size), jnp.float32, -bound2, bound2)
    b2 = jax.random.uniform(k4, (1, output_size), jnp.float32, -bound2, bound2)
    return w1, b1, w2, b2


# TODO(synk): Linear_QNet.save() (torch checkpoint I/O) is host-side and has no kernel equivalent.


if __name__ == "__main__":
    # Small shapes consistent with the module (snake-game style Q-net, scaled down).
    batch = 8
    input_size = 16
    hidden_size = 32
    output_size = 4

    key = jax.random.PRNGKey(0)
    kx, kp, kxl = jax.random.split(key, 3)
    x = jax.random.normal(kx, (batch, input_size), jnp.float32)
    w1, b1, w2, b2 = init_qnet_params(kp, input_size, hidden_size, output_size)

    # --- f32 path: must match the PyTorch math to tight tolerance ------------
    params_f32 = prepare_qnet_params(w1, b1, w2, b2, matmul_dtype=jnp.float32)
    out = linear_qnet_forward(x, *params_f32)
    out = jax.block_until_ready(out)
    ref = jnp.maximum(x @ w1 + b1, 0.0) @ w2 + b2
    assert out.shape == (batch, output_size)
    assert jnp.allclose(out, ref, atol=1e-5, rtol=1e-5), "f32 path mismatch"

    # --- large (ragged) batch, bf16-in-HBM path: exercises tiling + pipelining
    big_batch = 1000  # not a multiple of the tile size -> exercises exact adaptive tiling
    xl = jax.random.normal(kxl, (big_batch, input_size), jnp.float32)
    params_bf16 = prepare_qnet_params(w1, b1, w2, b2, matmul_dtype=jnp.bfloat16)
    out_l = linear_qnet_forward(xl.astype(jnp.bfloat16), *params_bf16)
    out_l = jax.block_until_ready(out_l)
    ref_l = jnp.maximum(xl @ w1 + b1, 0.0) @ w2 + b2
    assert out_l.shape == (big_batch, output_size)
    assert jnp.allclose(out_l, ref_l, atol=3e-2, rtol=3e-2), "bf16 path mismatch"

    print("KERNEL_OK")
</pallas_src>

<mosaic_0001>
module attributes {stable_mosaic.version = 11 : i64} {
  func.func @_qnet_kernel(%arg0: i32, %arg1: memref<8x16xf32, #tpu.memory_space<vmem>>, %arg2: memref<16x128xf32, #tpu.memory_space<vmem>>, %arg3: memref<1x128xf32, #tpu.memory_space<vmem>>, %arg4: memref<128x4xf32, #tpu.memory_space<vmem>>, %arg5: memref<1x4xf32, #tpu.memory_space<vmem>>, %arg6: memref<8x4xf32, #tpu.memory_space<vmem>>) attributes {dimension_semantics = [#tpu.dimension_semantics<parallel>], iteration_bounds = array<i64: 1>, scalar_prefetch = 0 : i64, scratch_operands = 0 : i64, tpu.core_type = #tpu.core_type<tc>, window_params = [{transform_indices = @transform_0, window_bounds = array<i64: 8, 16>}, {pipeline_mode = #tpu.pipeline_mode<synchronous>, transform_indices = @transform_1, window_bounds = array<i64: 16, 128>}, {pipeline_mode = #tpu.pipeline_mode<synchronous>, transform_indices = @transform_2, window_bounds = array<i64: 1, 128>}, {pipeline_mode = #tpu.pipeline_mode<synchronous>, transform_indices = @transform_3, window_bounds = array<i64: 128, 4>}, {pipeline_mode = #tpu.pipeline_mode<synchronous>, transform_indices = @transform_4, window_bounds = array<i64: 1, 4>}, {transform_indices = @transform_5, window_bounds = array<i64: 8, 4>}]} {
    %c0 = arith.constant 0 : index
    %c0_0 = arith.constant 0 : index
    %0 = vector.load %arg1[%c0, %c0_0] : memref<8x16xf32, #tpu.memory_space<vmem>>, vector<8x16xf32>
    %c0_1 = arith.constant 0 : index
    %c0_2 = arith.constant 0 : index
    %1 = vector.load %arg2[%c0_1, %c0_2] : memref<16x128xf32, #tpu.memory_space<vmem>>, vector<16x128xf32>
    %cst = arith.constant dense<0.000000e+00> : vector<8x128xf32>
    %2 = tpu.matmul %0, %1, %cst {dimension_numbers = #tpu.dot_dimension_numbers<[1], [0], [0], [1], [0, 0, 1, 1], [], []>} : vector<8x16xf32>, vector<16x128xf32>, vector<8x128xf32> -> vector<8x128xf32>
    %c0_3 = arith.constant 0 : index
    %c0_4 = arith.constant 0 : index
    %3 = vector.load %arg3[%c0_3, %c0_4] : memref<1x128xf32, #tpu.memory_space<vmem>>, vector<1x128xf32>
    %4 = vector.broadcast %3 : vector<1x128xf32> to vector<8x128xf32>
    %5 = arith.addf %2, %4 : vector<8x128xf32>
    %cst_5 = arith.constant 0.000000e+00 : f32
    %6 = vector.broadcast %cst_5 : f32 to vector<8x128xf32>
    %7 = arith.maximumf %5, %6 : vector<8x128xf32>
    %c0_6 = arith.constant 0 : index
    %c0_7 = arith.constant 0 : index
    %8 = vector.load %arg4[%c0_6, %c0_7] : memref<128x4xf32, #tpu.memory_space<vmem>>, vector<128x4xf32>
    %cst_8 = arith.constant dense<0.000000e+00> : vector<8x4xf32>
    %9 = tpu.matmul %7, %8, %cst_8 {dimension_numbers = #tpu.dot_dimension_numbers<[1], [0], [0], [1], [0, 0, 1, 1], [], []>} : vector<8x128xf32>, vector<128x4xf32>, vector<8x4xf32> -> vector<8x4xf32>
    %c0_9 = arith.constant 0 : index
    %c0_10 = arith.constant 0 : index
    %10 = vector.load %arg5[%c0_9, %c0_10] : memref<1x4xf32, #tpu.memory_space<vmem>>, vector<1x4xf32>
    %11 = vector.broadcast %10 : vector<1x4xf32> to vector<8x4xf32>
    %12 = arith.addf %9, %11 : vector<8x4xf32>
    %c0_11 = arith.constant 0 : index
    %c0_12 = arith.constant 0 : index
    %13 = vector.load %arg6[%c0_11, %c0_12] : memref<8x4xf32, #tpu.memory_space<vmem>>, vector<8x4xf32>
    tpu.vector_store %arg6[%c0_11, %c0_12], %12 {strides = array<i32>} : memref<8x4xf32, #tpu.memory_space<vmem>>, vector<8x4xf32>,
    return
  }
  func.func @transform_0(%arg0: i32) -> (i32, i32) {
    %c0_i32 = arith.constant 0 : i32
    %c0_i32_0 = arith.constant 0 : i32
    return %arg0, %c0_i32 : i32, i32
  }
  func.func @transform_1(%arg0: i32) -> (i32, i32) {
    %c0_i32 = arith.constant 0 : i32
    %c0_i32_0 = arith.constant 0 : i32
    %c0_i32_1 = arith.constant 0 : i32
    return %c0_i32, %c0_i32_0 : i32, i32
  }
  func.func @transform_2(%arg0: i32) -> (i32, i32) {
    %c0_i32 = arith.constant 0 : i32
    %c0_i32_0 = arith.constant 0 : i32
    %c0_i32_1 = arith.constant 0 : i32
    return %c0_i32, %c0_i32_0 : i32, i32
  }
  func.func @transform_3(%arg0: i32) -> (i32, i32) {
    %c0_i32 = arith.constant 0 : i32
    %c0_i32_0 = arith.constant 0 : i32
    %c0_i32_1 = arith.constant 0 : i32
    return %c0_i32, %c0_i32_0 : i32, i32
  }
  func.func @transform_4(%arg0: i32) -> (i32, i32) {
    %c0_i32 = arith.constant 0 : i32
    %c0_i32_0 = arith.constant 0 : i32
    %c0_i32_1 = arith.constant 0 : i32
    return %c0_i32, %c0_i32_0 : i32, i32
  }
  func.func @transform_5(%arg0: i32) -> (i32, i32) {
    %c0_i32 = arith.constant 0 : i32
    %c0_i32_0 = arith.constant 0 : i32
    return %arg0, %c0_i32 : i32, i32
  }
}

</mosaic_0001>

<llo_original>
// kernel: linear_qnet_forward.1
$region0: #{linear_qnet_forward.1}
  #allocation0 [shape = 'u32[]', space=smem, size = 0x4, offset = 0x4, fixed_abs, tag = 'smem constant byte address 0x4 - core index']
  #allocation1 [shape = 'u32[144,128]{1,0:T(1,128)}', space=vmem, size = 0x12000, scoped, tag = 'internal scratch']
  %s0 = inlined_call_operand.vmem [shape: f32[8,16], index: 0, kind: input, shape index: {}]
  %s1 = inlined_call_operand.vmem [shape: f32[16,128], index: 1, kind: input, shape index: {}]
  %s2 = inlined_call_operand.vmem [shape: f32[1,128], index: 2, kind: input, shape index: {}]
  %s3 = inlined_call_operand.vmem [shape: f32[128,4], index: 3, kind: input, shape index: {}]
  %s4 = inlined_call_operand.vmem [shape: f32[1,4], index: 4, kind: input, shape index: {}]
  %s5 = inlined_call_operand.vmem [shape: f32[8,4], index: 5, kind: output, shape index: {}]
  %s6 = sld [smem:[#allocation0]]
  $region30: #{linear_qnet_forward.1} parent=0
    _
  %s8 = ssub.s32 1, %s6
  %s9 = scalar_select 0, %s8, %s6
  // Predicated region
  $region2: #{linear_qnet_forward.1} parent=0 // pred_check
    _
  $region3: #{linear_qnet_forward.1} parent=0 // pred_check_branch
    %11 = sbr.rel (0) target = $region5
  $region4: #{linear_qnet_forward.1} parent=0 // pred_region
    _
  $region5: #{linear_qnet_forward.1} parent=0 // pred_fallthru
    _
  // Predicated region
  $region6: #{linear_qnet_forward.1} parent=0 // pred_check
    _
  $region7: #{linear_qnet_forward.1} parent=0 // pred_check_branch
    %13 = sbr.rel (0) target = $region9
  $region8: #{linear_qnet_forward.1} parent=0 // pred_region
    _
  $region9: #{linear_qnet_forward.1} parent=0 // pred_fallthru
    _
  // Predicated region
  $region10: #{linear_qnet_forward.1} parent=0 // pred_check
    _
  $region11: #{linear_qnet_forward.1} parent=0 // pred_check_branch
    %15 = sbr.rel (0) target = $region13
  $region12: #{linear_qnet_forward.1} parent=0 // pred_region
    _
  $region13: #{linear_qnet_forward.1} parent=0 // pred_fallthru
    _
  // Predicated region
  $region14: #{linear_qnet_forward.1} parent=0 // pred_check
    _
  $region15: #{linear_qnet_forward.1} parent=0 // pred_check_branch
    %17 = sbr.rel (0) target = $region17
  $region16: #{linear_qnet_forward.1} parent=0 // pred_region
    _
  $region17: #{linear_qnet_forward.1} parent=0 // pred_fallthru
    _
  // Predicated region
  $region18: #{linear_qnet_forward.1} parent=0 // pred_check
    _
  $region19: #{linear_qnet_forward.1} parent=0 // pred_check_branch
    %19 = sbr.rel (0) target = $region21
  $region20: #{linear_qnet_forward.1} parent=0 // pred_region
    _
  $region21: #{linear_qnet_forward.1} parent=0 // pred_fallthru
    _
  %v20 = vld [vmem:[%s0] sm:$0xff]
  %v21 = vld [vmem:[%s1] sm:$0xff]
  %v22 = vld [vmem:[%s1 + $0x8] sm:$0xff]
  %v23 = vld [vmem:[%s2] sm:$0x1]
  %v25 = vlaneseq
  %v26 = vshrl.u32 %v25, 7
  %v27 = vsub.s32 0, %v26
  %v28 = vrot.slane %v23, %v27
  %vm30 = vcmask 130048
  %v32 = vsel %vm30, %v20, 0
  %34 = vmatprep.subr.mxu0 0.0
  %35 = vmatpush1.msra.mxu0 0.0
  %36 = vmatprep.subr.mxu0 0.0
  %37 = vmatpush1.msra.mxu0 0.0
  %38 = vmatprep.subr.mxu0 0.0
  %39 = vmatpush1.msra.mxu0 0.0
  %40 = vmatprep.subr.mxu0 0.0
  %41 = vmatpush1.msra.mxu0 0.0
  %42 = vmatprep.subr.mxu0 0.0
  %43 = vmatpush1.msra.mxu0 0.0
  %44 = vmatprep.subr.mxu0 0.0
  %45 = vmatpush1.msra.mxu0 0.0
  %46 = vmatprep.subr.mxu0 0.0
  %47 = vmatpush1.msra.mxu0 0.0
  %48 = vmatprep.subr.mxu0 0.0
  %49 = vmatpush1.msra.mxu0 0.0
  %50 = vmatprep.subr.mxu0 0.0
  %51 = vmatpush1.msra.mxu0 0.0
  %52 = vmatprep.subr.mxu0 0.0
  %53 = vmatpush1.msra.mxu0 0.0
  %54 = vmatprep.subr.mxu0 0.0
  %55 = vmatpush1.msra.mxu0 0.0
  %56 = vmatprep.subr.mxu0 0.0
  %57 = vmatpush1.msra.mxu0 0.0
  %58 = vmatprep.subr.mxu0 0.0
  %59 = vmatpush1.msra.mxu0 0.0
  %60 = vmatprep.subr.mxu0 0.0
  %61 = vmatpush1.msra.mxu0 0.0
  %62 = vmatprep.subr.mxu0 0.0
  %63 = vmatpush1.msra.mxu0 %v22
  %64 = vmatprep.subr.mxu0 0.0
  %65 = vmatpush1.msra.mxu0 %v21
  %66 = vmatprep.subr.mxu0 0.0
  %67 = vmatpush2.msra.mxu0 0.0
  %68 = vmatprep.subr.mxu0 0.0
  %69 = vmatpush2.msra.mxu0 0.0
  %70 = vmatprep.subr.mxu0 0.0
  %71 = vmatpush2.msra.mxu0 0.0
  %72 = vmatprep.subr.mxu0 0.0
  %73 = vmatpush2.msra.mxu0 0.0
  %74 = vmatprep.subr.mxu0 0.0
  %75 = vmatpush2.msra.mxu0 0.0
  %76 = vmatprep.subr.mxu0 0.0
  %77 = vmatpush2.msra.mxu0 0.0
  %78 = vmatprep.subr.mxu0 0.0
  %79 = vmatpush2.msra.mxu0 0.0
  %80 = vmatprep.subr.mxu0 0.0
  %81 = vmatpush2.msra.mxu0 0.0
  %82 = vmatprep.subr.mxu0 0.0
  %83 = vmatpush2.msra.mxu0 0.0
  %84 = vmatprep.subr.mxu0 0.0
  %85 = vmatpush2.msra.mxu0 0.0
  %86 = vmatprep.subr.mxu0 0.0
  %87 = vmatpush2.msra.mxu0 0.0
  %88 = vmatprep.subr.mxu0 0.0
  %89 = vmatpush2.msra.mxu0 0.0
  %90 = vmatprep.subr.mxu0 0.0
  %91 = vmatpush2.msra.mxu0 0.0
  %92 = vmatprep.subr.mxu0 0.0
  %93 = vmatpush2.msra.mxu0 0.0
  %94 = vmatprep.subr.mxu0 0.0
  %95 = vmatpush2.msra.mxu0 0.0
  %96 = vmatprep.subr.mxu0 0.0
  %97 = vmatpush2.msra.mxu0 0.0
  %98 = vmatprep.mubr.f32.mxu0 0.0
  %99 = vmatmul.mubr.f32.gmra.mxu0 %v32
  %v100 = vpop.f32.mrf.mxu0
  %v101 = vadd.f32 %v28, %v100
  %v102 = vpop.f32.mrf.mxu0
  %103 = vdwg.mxu0
  %v104 = vmax.f32 %v101, 0.0
  %v105 = vld [vmem:[%s3] sm:$0xff]
  %v106 = vld [vmem:[%s3 + $0x8] sm:$0xff]
  %v107 = vld [vmem:[%s3 + $0x10] sm:$0xff]
  %v108 = vld [vmem:[%s3 + $0x18] sm:$0xff]
  %v109 = vld [vmem:[%s3 + $0x20] sm:$0xff]
  %v110 = vld [vmem:[%s3 + $0x28] sm:$0xff]
  %v111 = vld [vmem:[%s3 + $0x30] sm:$0xff]
  %v112 = vld [vmem:[%s3 + $0x38] sm:$0xff]
  %v113 = vld [vmem:[%s3 + $0x40] sm:$0xff]
  %v114 = vld [vmem:[%s3 + $0x48] sm:$0xff]
  %v115 = vld [vmem:[%s3 + $0x50] sm:$0xff]
  %v116 = vld [vmem:[%s3 + $0x58] sm:$0xff]
  %v117 = vld [vmem:[%s3 + $0x60] sm:$0xff]
  %v118 = vld [vmem:[%s3 + $0x68] sm:$0xff]
  %v119 = vld [vmem:[%s3 + $0x70] sm:$0xff]
  %v120 = vld [vmem:[%s3 + $0x78] sm:$0xff]
  %v121 = vld [vmem:[%s4] sm:$0x1]
  %v123 = vlaneseq
  %v124 = vshrl.u32 %v123, 7
  %v125 = vsub.s32 0, %v124
  %v126 = vrot.slane %v121, %v125
  %128 = vmatprep.subr.mxu0 0.0
  %129 = vmatpush1.msra.mxu0 %v120
  %130 = vmatprep.subr.mxu0 0.0
  %131 = vmatpush1.msra.mxu0 %v119
  %132 = vmatprep.subr.mxu0 0.0
  %133 = vmatpush1.msra.mxu0 %v118
  %134 = vmatprep.subr.mxu0 0.0
  %135 = vmatpush1.msra.mxu0 %v117
  %136 = vmatprep.subr.mxu0 0.0
  %137 = vmatpush1.msra.mxu0 %v116
  %138 = vmatprep.subr.mxu0 0.0
  %139 = vmatpush1.msra.mxu0 %v115
  %140 = vmatprep.subr.mxu0 0.0
  %141 = vmatpush1.msra.mxu0 %v114
  %142 = vmatprep.subr.mxu0 0.0
  %143 = vmatpush1.msra.mxu0 %v113
  %144 = vmatprep.subr.mxu0 0.0
  %145 = vmatpush1.msra.mxu0 %v112
  %146 = vmatprep.subr.mxu0 0.0
  %147 = vmatpush1.msra.mxu0 %v111
  %148 = vmatprep.subr.mxu0 0.0
  %149 = vmatpush1.msra.mxu0 %v110
  %150 = vmatprep.subr.mxu0 0.0
  %151 = vmatpush1.msra.mxu0 %v109
  %152 = vmatprep.subr.mxu0 0.0
  %153 = vmatpush1.msra.mxu0 %v108
  %154 = vmatprep.subr.mxu0 0.0
  %155 = vmatpush1.msra.mxu0 %v107
  %156 = vmatprep.subr.mxu0 0.0
  %157 = vmatpush1.msra.mxu0 %v106
  %158 = vmatprep.subr.mxu0 0.0
  %159 = vmatpush1.msra.mxu0 %v105
  %160 = vmatprep.subr.mxu0 0.0
  %161 = vmatpush2.msra.mxu0 0.0
  %162 = vmatprep.subr.mxu0 0.0
  %163 = vmatpush2.msra.mxu0 0.0
  %164 = vmatprep.subr.mxu0 0.0
  %165 = vmatpush2.msra.mxu0 0.0
  %166 = vmatprep.subr.mxu0 0.0
  %167 = vmatpush2.msra.mxu0 0.0
  %168 = vmatprep.subr.mxu0 0.0
  %169 = vmatpush2.msra.mxu0 0.0
  %170 = vmatprep.subr.mxu0 0.0
  %171 = vmatpush2.msra.mxu0 0.0
  %172 = vmatprep.subr.mxu0 0.0
  %173 = vmatpush2.msra.mxu0 0.0
  %174 = vmatprep.subr.mxu0 0.0
  %175 = vmatpush2.msra.mxu0 0.0
  %176 = vmatprep.subr.mxu0 0.0
  %177 = vmatpush2.msra.mxu0 0.0
  %178 = vmatprep.subr.mxu0 0.0
  %179 = vmatpush2.msra.mxu0 0.0
  %180 = vmatprep.subr.mxu0 0.0
  %181 = vmatpush2.msra.mxu0 0.0
  %182 = vmatprep.subr.mxu0 0.0
  %183 = vmatpush2.msra.mxu0 0.0
  %184 = vmatprep.subr.mxu0 0.0
  %185 = vmatpush2.msra.mxu0 0.0
  %186 = vmatprep.subr.mxu0 0.0
  %187 = vmatpush2.msra.mxu0 0.0
  %188 = vmatprep.subr.mxu0 0.0
  %189 = vmatpush2.msra.mxu0 0.0
  %190 = vmatprep.subr.mxu0 0.0
  %191 = vmatpush2.msra.mxu0 0.0
  %192 = vmatprep.mubr.f32.mxu0 0.0
  %193 = vmatmul.mubr.f32.gmra.mxu0 %v104
  %v194 = vpop.f32.mrf.mxu0
  %v195 = vadd.f32 %v126, %v194
  %v196 = vpop.f32.mrf.mxu0
  %197 = vdwg.mxu0
  %vm198 = vcmask 31744
  %199 = vst.msk [vmem:[%s5] sm:$0xff] %vm198, %v195
  // Predicated region
  $region22: #{linear_qnet_forward.1} parent=0 // pred_check
    _
  $region23: #{linear_qnet_forward.1} parent=0 // pred_check_branch
    %201 = sbr.rel (0) target = $region25
  $region24: #{linear_qnet_forward.1} parent=0 // pred_region
    _
  $region25: #{linear_qnet_forward.1} parent=0 // pred_fallthru
    _
  // Predicated region
  $region26: #{linear_qnet_forward.1} parent=0 // pred_check
    _
  $region27: #{linear_qnet_forward.1} parent=0 // pred_check_branch
    %203 = sbr.rel (0) target = $region29
  $region28: #{linear_qnet_forward.1} parent=0 // pred_region
    _
  $region29: #{linear_qnet_forward.1} parent=0 // pred_fallthru
    _

</llo_original>
